<compile_context>
chip_gen: v5e
topology: v5e:2x2
jax: 0.10.0
libtpu: 0.0.40
codegen_flags: <defaults>
</compile_context>

<pallas_src>
"""Pallas TPU kernel for the forward pass of PyTorch PositionalEncoding.

out = X + P[:, :seq_len, :]   (nn.Dropout is identity in eval mode)

Design notes (incorporating the perf review):
  * P is built once in plain JAX (parameter setup), shape (1, max_len, hidden).
  * The hot path is a pure HBM-bandwidth-bound broadcast add, so the kernel is
    100% layout work:
      - x and the sliced P are flattened to (batch, seq*hidden) so the trailing
        axis is lane-dense (full-width stores even when hidden < 128).
      - Column tile = largest multiple of 128 that fits a per-step byte budget;
        a cdiv grid lets Pallas pad/mask the ragged last block, so the tile
        never collapses to 128 and never falls back to a full-extent tile that
        could blow past the VMEM limit (review item 1).
      - Tile / VMEM budgets are generation-aware via pltpu.get_tpu_info():
        larger tiles on 128 MiB VMEM chips (v5e/v6e), a smaller budget capped
        by the 64 MiB per-TC VMEM on v7x (review items 2-4).
      - Grid order is (col_tile, row_tile): P's block index does not depend on
        the row axis, so the same P tile is revisited consecutively and is not
        re-DMA'd per batch-row block.
      - A (1,1) grid is force-split along the column axis so both v7x
        TensorCores get a parallel block (harmless on single-TC chips).
      - input_output_aliases={0: 0}: the add is done in place on x's HBM
        buffer (no separate output allocation when x is donated).
      - P is cast to x.dtype in the wrapper; the kernel body is a single add.
  * Tiny inputs or batch == 1 bypass Pallas (no traffic advantage over the XLA
    fused add there); the demo forces the Pallas path so the kernel runs.

TODO(synk): training-mode dropout (in-kernel pltpu.prng_seed + prng_random_bits
            mask with 1/(1-p) scaling) is not applied; eval-mode semantics only.
TODO(synk): dtype policy — P is cast down to x.dtype; PyTorch would promote a
            bf16 x to float32 for the add. Demo uses float32, where both match.
"""

import jax
import jax.numpy as jnp
from jax.experimental import pallas as pl
from jax.experimental.pallas import tpu as pltpu


# ------------------------- parameter construction -------------------------- #

def make_positional_encoding(num_hiddens: int, max_len: int = 1000) -> jnp.ndarray:
    """Builds P of shape (1, max_len, num_hiddens), identical to the torch init."""
    pos = jnp.arange(max_len, dtype=jnp.float32).reshape(-1, 1)
    div = jnp.power(
        10000.0, jnp.arange(0, num_hiddens, 2, dtype=jnp.float32) / num_hiddens
    )
    X = pos / div  # (max_len, ceil(num_hiddens/2))
    P = jnp.zeros((max_len, num_hiddens), dtype=jnp.float32)
    P = P.at[:, 0::2].set(jnp.sin(X))
    P = P.at[:, 1::2].set(jnp.cos(X[:, : num_hiddens // 2]))
    return P[None, :, :]  # (1, max_len, num_hiddens)


# ----------------------------- Pallas kernel ------------------------------- #

def _pe_add_kernel(x_ref, p_ref, o_ref):
    # x_ref: (TR, TC) batch rows of the flattened (seq*hidden) activations
    # p_ref: (1,  TC) matching slice of the flattened positional encoding
    # Single broadcast add; lane-dense store along the trailing axis.
    o_ref[...] = x_ref[...] + p_ref[...]


def _round_up(n: int, m: int) -> int:
    return ((n + m - 1) // m) * m


def _budgets() -> tuple[int, int]:
    """(per-step x-tile byte budget, vmem_limit_bytes), generation-aware.

    128 MiB VMEM chips (v5e/v6e): 8 MiB x tile, 64 MiB scoped VMEM.
    64 MiB per-TC chips (v7x) and unknown: 6 MiB x tile, 48 MiB scoped VMEM.
    """
    try:
        vmem_cap = pltpu.get_tpu_info().vmem_capacity_bytes
    except Exception:
        vmem_cap = 64 * 1024 * 1024
    if vmem_cap >= 100 * 1024 * 1024:
        return 8 * 1024 * 1024, 64 * 1024 * 1024
    return 6 * 1024 * 1024, 48 * 1024 * 1024


def _pe_pallas(x2d: jnp.ndarray, p2d: jnp.ndarray,
               *, max_x_tile_bytes: int, vmem_limit_bytes: int) -> jnp.ndarray:
    batch, L = x2d.shape
    itemsize = x2d.dtype.itemsize

    # Row tile: full extent for tiny batches (always layout-legal), otherwise a
    # multiple of 8 sublanes; the ragged last row block is masked by cdiv grid.
    if batch <= 8:
        tr = batch
    else:
        tr = min((batch // 8) * 8, 256)

    # Column tile: largest multiple of 128 within the byte budget. The ragged
    # last column block is padded on load / masked on store by Pallas, so the
    # tile never has to divide L and never falls back to the full extent.
    max_cols = max(128, max_x_tile_bytes // (tr * itemsize))
    if L <= max_cols:
        tc = L  # full extent (layout-legal regardless of alignment)
    else:
        tc = max(128, (max_cols // 128) * 128)

    n_col = pl.cdiv(L, tc)
    n_row = pl.cdiv(batch, tr)

    # v7x has 2 TensorCores: never hand the whole array to a single (1,1) grid
    # point; split the column axis so both cores get a parallel block.
    # (Costs ~0.35us of extra step overhead on single-TC v5e/v6e — negligible.)
    if n_col == 1 and n_row == 1 and L >= 256:
        tc = _round_up(pl.cdiv(L, 2), 128)
        n_col = pl.cdiv(L, tc)

    # Columns outer, rows inner: P's block index depends only on the column
    # tile, so the same P tile is revisited consecutively and not re-fetched.
    grid = (n_col, n_row)

    return pl.pallas_call(
        _pe_add_kernel,
        out_shape=jax.ShapeDtypeStruct((batch, L), x2d.dtype),
        grid_spec=pltpu.PrefetchScalarGridSpec(
            num_scalar_prefetch=0,
            grid=grid,
            in_specs=[
                pl.BlockSpec((tr, tc), lambda c, r: (r, c)),
                pl.BlockSpec((1, tc), lambda c, r: (0, c)),
            ],
            out_specs=pl.BlockSpec((tr, tc), lambda c, r: (r, c)),
        ),
        # Add in place on x's HBM buffer: no extra output allocation when x is
        # donated; XLA inserts a copy automatically if the caller still needs x.
        input_output_aliases={0: 0},
        compiler_params=pltpu.CompilerParams(
            dimension_semantics=("parallel", "parallel"),
            vmem_limit_bytes=vmem_limit_bytes,
        ),
    )(x2d, p2d)


# ------------------------------- wrapper ----------------------------------- #

def positional_encoding_forward(x: jnp.ndarray, P: jnp.ndarray,
                                *, min_pallas_bytes: int = 4 << 20,
                                force_pallas: bool = False,
                                max_x_tile_bytes: int | None = None) -> jnp.ndarray:
    """x: (batch, seq_len, num_hiddens). Returns x + P[:, :seq_len, :] (eval dropout)."""
    batch, seq_len, hidden = x.shape
    L = seq_len * hidden

    # Layout plumbing in plain JAX: slice P, match dtype, flatten (seq, hidden)
    # into one lane-dense trailing axis.
    p2d = P[:, :seq_len, :].astype(x.dtype).reshape(1, L)
    x2d = x.reshape(batch, L)

    tile_budget, vmem_limit = _budgets()
    if max_x_tile_bytes is not None:
        tile_budget = max_x_tile_bytes

    # The kernel's only traffic advantage over the XLA fused add is not
    # re-reading P per batch row; for batch==1 or small inputs, launch +
    # per-step overhead makes Pallas a net loss on every TPU generation.
    use_pallas = force_pallas or (
        batch > 1 and x2d.size * x2d.dtype.itemsize >= min_pallas_bytes
    )

    if use_pallas:
        out2d = _pe_pallas(x2d, p2d,
                           max_x_tile_bytes=tile_budget,
                           vmem_limit_bytes=vmem_limit)
    else:
        out2d = x2d + p2d

    # TODO(synk): training-mode dropout not applied (eval-mode identity).
    return out2d.reshape(batch, seq_len, hidden)


# --------------------------------- demo ------------------------------------ #

if __name__ == "__main__":
    # Shapes matching the module's (B, T, H) convention.
    num_hiddens = 32
    max_len = 64
    batch = 2
    seq_len = 8
    dropout_p = 0.1  # eval mode -> identity

    P = make_positional_encoding(num_hiddens, max_len)
    key = jax.random.PRNGKey(0)
    x = jax.random.normal(key, (batch, seq_len, num_hiddens), dtype=jnp.float32)

    ref = x + P[:, :seq_len, :]                      # reference before kernel call
    out = positional_encoding_forward(x, P, force_pallas=True)
    out = jax.block_until_ready(out)
    assert out.shape == (batch, seq_len, num_hiddens)
    assert jnp.allclose(out, ref, atol=1e-6), "mismatch vs reference (small shape)"

    # Secondary check: force a multi-tile column grid.
    b2, s2, h2 = 8, 64, 128
    P2 = make_positional_encoding(h2, max_len=256)
    x2 = jax.random.normal(jax.random.PRNGKey(1), (b2, s2, h2), dtype=jnp.float32)
    ref2 = x2 + P2[:, :s2, :]
    out2 = positional_encoding_forward(
        x2, P2, force_pallas=True, max_x_tile_bytes=64 * 1024  # forces tc < L
    )
    out2 = jax.block_until_ready(out2)
    assert jnp.allclose(out2, ref2, atol=1e-6), "mismatch vs reference (tiled shape)"

    # Third check: ragged cdiv grid (L not a multiple of the 128-wide tile) and
    # a ragged row axis (batch not a multiple of the 8-row tile cap path).
    b3, s3, h3 = 16, 10, 96
    P3 = make_positional_encoding(h3, max_len=32)
    x3 = jax.random.normal(jax.random.PRNGKey(2), (b3, s3, h3), dtype=jnp.float32)
    ref3 = x3 + P3[:, :s3, :]
    out3 = positional_encoding_forward(
        x3, P3, force_pallas=True, max_x_tile_bytes=4 * 1024  # forces tc=128, ragged last block
    )
    out3 = jax.block_until_ready(out3)
    assert jnp.allclose(out3, ref3, atol=1e-6), "mismatch vs reference (ragged shape)"

    print("KERNEL_OK")
</pallas_src>

<mosaic_0001>
module attributes {stable_mosaic.version = 11 : i64} {
  func.func @_pe_add_kernel(%arg0: i32, %arg1: i32, %arg2: memref<2x128xf32, #tpu.memory_space<vmem>>, %arg3: memref<1x128xf32, #tpu.memory_space<vmem>>, %arg4: memref<2x128xf32, #tpu.memory_space<vmem>>) attributes {dimension_semantics = [#tpu.dimension_semantics<parallel>, #tpu.dimension_semantics<parallel>], iteration_bounds = array<i64: 2, 1>, scalar_prefetch = 0 : i64, scratch_operands = 0 : i64, tpu.core_type = #tpu.core_type<tc>, window_params = [{transform_indices = @transform_0, window_bounds = array<i64: 2, 128>}, {transform_indices = @transform_1, window_bounds = array<i64: 1, 128>}, {transform_indices = @transform_2, window_bounds = array<i64: 2, 128>}]} {
    %c0 = arith.constant 0 : index
    %c0_0 = arith.constant 0 : index
    %0 = vector.load %arg2[%c0, %c0_0] : memref<2x128xf32, #tpu.memory_space<vmem>>, vector<2x128xf32>
    %c0_1 = arith.constant 0 : index
    %c0_2 = arith.constant 0 : index
    %1 = vector.load %arg3[%c0_1, %c0_2] : memref<1x128xf32, #tpu.memory_space<vmem>>, vector<1x128xf32>
    %2 = vector.broadcast %1 : vector<1x128xf32> to vector<2x128xf32>
    %3 = arith.addf %0, %2 : vector<2x128xf32>
    %c0_3 = arith.constant 0 : index
    %c0_4 = arith.constant 0 : index
    %4 = vector.load %arg4[%c0_3, %c0_4] : memref<2x128xf32, #tpu.memory_space<vmem>>, vector<2x128xf32>
    tpu.vector_store %arg4[%c0_3, %c0_4], %3 {strides = array<i32>} : memref<2x128xf32, #tpu.memory_space<vmem>>, vector<2x128xf32>,
    return
  }
  func.func @transform_0(%arg0: i32, %arg1: i32) -> (i32, i32) {
    %c0_i32 = arith.constant 0 : i32
    return %arg1, %arg0 : i32, i32
  }
  func.func @transform_1(%arg0: i32, %arg1: i32) -> (i32, i32) {
    %c0_i32 = arith.constant 0 : i32
    %c0_i32_0 = arith.constant 0 : i32
    return %c0_i32, %arg0 : i32, i32
  }
  func.func @transform_2(%arg0: i32, %arg1: i32) -> (i32, i32) {
    %c0_i32 = arith.constant 0 : i32
    return %arg1, %arg0 : i32, i32
  }
}

</mosaic_0001>

<llo_original>
// kernel: tpu_custom_call.1
$region0: #{tpu_custom_call.1}
  #allocation0 [shape = 'u32[]', space=smem, size = 0x4, offset = 0x4, fixed_abs, tag = 'smem constant byte address 0x4 - core index']
  #allocation1 [shape = 'u32[72,128]{1,0:T(1,128)}', space=vmem, size = 0x9000, scoped, tag = 'internal scratch']
  %s0 = inlined_call_operand.hbm [shape: f32[2,256], index: 0, kind: input, shape index: {}, may-alias: {0,2}]
  %s1 = inlined_call_operand.vmem [shape: f32[1,256], index: 1, kind: input, shape index: {}]
  %s2 = inlined_call_operand.hbm [shape: f32[2,256], index: 2, kind: output, shape index: {}, may-alias: {0,2}]
  %s3 = sld [smem:[#allocation0]]
  $region45: #{tpu_custom_call.1} parent=0
    _
  %s5 = ssub.s32 1, %s3
  %s6 = scalar_select 0, %s5, %s3
  $region1: #{tpu_custom_call.1} parent=0
    #allocation2 [shape = 'u8[2048]{0}', space=vmem, size = 0x800, scoped, tag = 'input window, operand 0']
    #allocation3 [shape = 's32[2]{0}', space=sflag, size = 0x8, scoped, tag = 'scoped memory for tpu_custom_call.1']
    #allocation4 [shape = 's32[2]{0}', space=sflag, size = 0x8, scoped, tag = 'scoped memory for tpu_custom_call.1']
    #allocation5 [shape = 'u8[2048]{0}', space=vmem, size = 0x800, scoped, tag = 'output window, operand 0']
    %7 = vsyncpa [#allocation3], 0
    %s8 = scalar_lea.sflag [#allocation3], 1
    %9 = vsyncpa %s8, 0
    %10 = vsyncpa [#allocation4], 0
    %s11 = scalar_lea.sflag [#allocation4], 1
    %12 = vsyncpa %s11, 0
    loop: start=0, step=1, limit=4
    $region2: #{tpu_custom_call.1} parent=1 // loop_pre_header
      _
    $region3: #{tpu_custom_call.1} parent=1 // loop_header
      %s14 = sphi 0, %s18
      %p15 = scmp.ge.s32.totalorder %s14, 4
      %s21 = sphi 0, %s33
      %s22 = sphi 0, %s29
      %s23 = sphi 0, %s21
      %s24 = sphi 0, %s22
      %s25 = sphi 0, %s23
      %s26 = sphi 0, %s24
      %s38 = sphi 0, %s40
      %s41 = sphi 0, %s38
      %s42 = sphi 0, %s41
      %s58 = sphi 0, %s42
      %s64 = sphi 0, %s66
      %s67 = sphi 0, %s64
      %s68 = sphi 0, %s67
      %s84 = sphi 0, %s68
      %s92 = sphi 0, %s94
      %s95 = sphi 0, %s92
      %s96 = sphi 0, %s95
      %s112 = sphi 0, %s96
    $region4: #{tpu_custom_call.1} parent=1 // loop_header_branch
      %17 = sbr.rel (%p15) target = $region8
    $region5: #{tpu_custom_call.1} parent=1 // loop_body
      %s19 = ssub.s32 %s14, 1
      %s20 = ssub.s32 %s14, 2
      %s27 = sadd.s32 1, %s22
      %p28 = scmp.ge.s32.totalorder %s27, 1
      %s29 = scalar_select %p28, 0, %s27
      %s30 = sadd.s32 1, %s21
      %s31 = scalar_select %p28, %s30, %s21
      %p32 = scmp.ge.s32.totalorder %s31, 2
      %s33 = scalar_select %p32, 0, %s31
      %s34 = ssub.s32 %s22, %s29
      %s35 = ssub.s32 %s21, %s33
      %s36 = sor.u32 %s34, %s35
      %p37 = scmp.eq.s32.totalorder %s36, 0
      %s39 = sadd.s32 %s38, 1
      %s40 = scalar_select %p37, %s38, %s39
      %p43 = pneg %p37
      %p44 = scmp.eq.s32.totalorder %s14, 1
      %p45 = por %p43, %p44
      %p46 = scmp.ne.s32.totalorder %s38, %s41
      %p47 = scmp.eq.s32.totalorder %s14, 0
      %p48 = por %p46, %p47
      %p49 = scmp.ne.s32.totalorder %s38, %s41
      %p50 = scmp.eq.s32.totalorder %s19, 1
      %p51 = por %p49, %p50
      %p52 = scmp.ne.s32.totalorder %s41, %s42
      %p53 = scmp.eq.s32.totalorder %s19, 0
      %p54 = por %p52, %p53
      %p55 = scmp.ne.s32.totalorder %s41, %s42
      %p56 = scmp.eq.s32.totalorder %s20, 1
      %p57 = por %p55, %p56
      %p59 = scmp.ne.s32.totalorder %s42, %s58
      %p60 = scmp.eq.s32.totalorder %s20, 0
      %p61 = por %p59, %p60
      %s62 = ssub.s32 %s21, %s33
      %p63 = scmp.eq.s32.totalorder %s62, 0
      %s65 = sadd.s32 %s64, 1
      %s66 = scalar_select %p63, %s64, %s65
      %p69 = pneg %p63
      %p70 = scmp.eq.s32.totalorder %s14, 1
      %p71 = por %p69, %p70
      %p72 = scmp.ne.s32.totalorder %s64, %s67
      %p73 = scmp.eq.s32.totalorder %s14, 0
      %p74 = por %p72, %p73
      %p75 = scmp.ne.s32.totalorder %s64, %s67
      %p76 = scmp.eq.s32.totalorder %s19, 1
      %p77 = por %p75, %p76
      %p78 = scmp.ne.s32.totalorder %s67, %s68
      %p79 = scmp.eq.s32.totalorder %s19, 0
      %p80 = por %p78, %p79
      %p81 = scmp.ne.s32.totalorder %s67, %s68
      %p82 = scmp.eq.s32.totalorder %s20, 1
      %p83 = por %p81, %p82
      %p85 = scmp.ne.s32.totalorder %s68, %s84
      %p86 = scmp.eq.s32.totalorder %s20, 0
      %p87 = por %p85, %p86
      %s88 = ssub.s32 %s22, %s29
      %s89 = ssub.s32 %s21, %s33
      %s90 = sor.u32 %s88, %s89
      %p91 = scmp.eq.s32.totalorder %s90, 0
      %s93 = sadd.s32 %s92, 1
      %s94 = scalar_select %p91, %s92, %s93
      %p97 = pneg %p91
      %p98 = scmp.eq.s32.totalorder %s14, 1
      %p99 = por %p97, %p98
      %p100 = scmp.ne.s32.totalorder %s92, %s95
      %p101 = scmp.eq.s32.totalorder %s14, 0
      %p102 = por %p100, %p101
      %p103 = scmp.ne.s32.totalorder %s92, %s95
      %p104 = scmp.eq.s32.totalorder %s19, 1
      %p105 = por %p103, %p104
      %p106 = scmp.ne.s32.totalorder %s95, %s96
      %p107 = scmp.eq.s32.totalorder %s19, 0
      %p108 = por %p106, %p107
      %p109 = scmp.ne.s32.totalorder %s95, %s96
      %p110 = scmp.eq.s32.totalorder %s20, 1
      %p111 = por %p109, %p110
      %p113 = scmp.ne.s32.totalorder %s96, %s112
      %p114 = scmp.eq.s32.totalorder %s20, 0
      %p115 = por %p113, %p114
      %p116 = scmp.le.s32.totalorder 1, %s14
      %p117 = scmp.lt.s32.totalorder %s14, 3
      %p118 = pnand %p116, %p117
      %p119 = pneg %p118
      // Predicated region
      $region9: #{tpu_custom_call.1} parent=5 // pred_check
        _
      $region10: #{tpu_custom_call.1} parent=5 // pred_check_branch
        %121 = sbr.rel (%p118) target = $region12
      $region11: #{tpu_custom_call.1} parent=5 // pred_region
        %s122 = ssub.s32 %s14, 1
      $region12: #{tpu_custom_call.1} parent=5 // pred_fallthru
        _
      %p123 = scmp.lt.s32.totalorder %s14, 2
      // Predicated region
      $region13: #{tpu_custom_call.1} parent=5 // pred_check
        %p124 = pneg %p123
      $region14: #{tpu_custom_call.1} parent=5 // pred_check_branch
        %126 = sbr.rel (%p124) target = $region16
      $region15: #{tpu_custom_call.1} parent=5 // pred_region
        // Predicated region
        $region17: #{tpu_custom_call.1} parent=15 // pred_check
          %p127 = pneg %p48
        $region18: #{tpu_custom_call.1} parent=15 // pred_check_branch
          %129 = sbr.rel (%p127) target = $region20
        $region19: #{tpu_custom_call.1} parent=15 // pred_region
          %s130 = sand.u32 %s38, 1
          %s131 = scalar_lea.sflag [#allocation3], %s130
          %s132 = sand.u32 %s38, 1
          %s133 = smul.addr %s132, 2
          %s134 = scalar_lea.vmem [#allocation2], %s133
          %136 = vsyncadd %s131, 0
          %s137 = smul.addr %s22, 2
          %s138 = sadd.s32 %s21, %s137
          %s139 = smul.addr %s138, 2
          %s140 = scalar_lea.hbm %s0, %s139
          %s142 = sshll.u32 %s140, 4
          %s143 = int_to_ptr.hbm [resolvable:$true] %s142
          %s144 = sshll.u32 %s134, 4
          %s145 = int_to_ptr.vmem [resolvable:$true] %s144
          %147 = dma.hbm_to_vmem [thread:$0]  %s143, 32, %s145, %s131
        $region20: #{tpu_custom_call.1} parent=15 // pred_fallthru
          _
        // Predicated region
        $region21: #{tpu_custom_call.1} parent=15 // pred_check
          %p148 = pneg %p74
        $region22: #{tpu_custom_call.1} parent=15 // pred_check_branch
          %150 = sbr.rel (%p148) target = $region24
        $region23: #{tpu_custom_call.1} parent=15 // pred_region
          %p151 = scmp.lt.s32.totalorder %s21, 1
          %s152 = scalar_select %p151, %s21, 1
          %s153 = scalar_lea.vmem %s1, %s152
        $region24: #{tpu_custom_call.1} parent=15 // pred_fallthru
          _
      $region16: #{tpu_custom_call.1} parent=5 // pred_fallthru
        _
      %p154 = scmp.le.s32.totalorder 1, %s14
      %p155 = scmp.lt.s32.totalorder %s14, 3
      %p156 = pnand %p154, %p155
      %p157 = pneg %p156
      // Predicated region
      $region25: #{tpu_custom_call.1} parent=5 // pred_check
        _
      $region26: #{tpu_custom_call.1} parent=5 // pred_check_branch
        %159 = sbr.rel (%p156) target = $region28
      $region27: #{tpu_custom_call.1} parent=5 // pred_region
        %s160 = ssub.s32 %s14, 1
        %s161 = sand.u32 %s41, 1
        %s162 = scalar_lea.sflag [#allocation3], %s161
        %s163 = sand.u32 %s41, 1
        %s164 = smul.addr %s163, 2
        %s165 = scalar_lea.vmem [#allocation2], %s164
        // Predicated region
        $region29: #{tpu_custom_call.1} parent=27 // pred_check
          %p166 = pneg %p54
        $region30: #{tpu_custom_call.1} parent=27 // pred_check_branch
          %168 = sbr.rel (%p166) target = $region32
        $region31: #{tpu_custom_call.1} parent=27 // pred_region
          %170 = dma.done %s162, 32
        $region32: #{tpu_custom_call.1} parent=27 // pred_fallthru
          _
        %s171 = sand.u32 %s41, 1
        %s172 = scalar_lea.sflag [#allocation3], %s171
        %s173 = sand.u32 %s41, 1
        %s174 = smul.addr %s173, 2
        %s175 = scalar_lea.vmem [#allocation2], %s174
        %p176 = pneg %p54
        %p177 = pneg %p51
        %p178 = scmp.lt.s32.totalorder %s23, 1
        %s179 = scalar_select %p178, %s23, 1
        %s180 = scalar_lea.vmem %s1, %s179
        %p181 = pneg %p80
        %p182 = pneg %p77
        %p183 = pneg %p108
        %p184 = pneg %p105
        %s185 = sand.u32 %s95, 1
        %s186 = scalar_lea.sflag [#allocation4], %s185
        %s187 = sand.u32 %s95, 1
        %s188 = smul.addr %s187, 2
        %s189 = scalar_lea.vmem [#allocation5], %s188
        %p190 = scmp.lt.s32.totalorder %s23, 1
        %s191 = scalar_select %p190, %s23, 1
        %s192 = scalar_lea.vmem %s1, %s191
        %v193 = vld [vmem:[%s165] sm:$0x3]
        %v194 = vld [vmem:[%s192] sm:$0x1]
        %v196 = vperm.slane %v194, 0
        %v198 = vadd.f32 %v193, %v196
        %199 = vst [vmem:[%s189] sm:$0x3] %v198
        %s200 = sand.u32 %s95, 1
        %s201 = scalar_lea.sflag [#allocation4], %s200
        %s202 = sand.u32 %s95, 1
        %s203 = smul.addr %s202, 2
        %s204 = scalar_lea.vmem [#allocation5], %s203
        // Predicated region
        $region33: #{tpu_custom_call.1} parent=27 // pred_check
          %p205 = pneg %p105
        $region34: #{tpu_custom_call.1} parent=27 // pred_check_branch
          %207 = sbr.rel (%p205) target = $region36
        $region35: #{tpu_custom_call.1} parent=27 // pred_region
          %209 = vsyncadd %s201, 0
          %s210 = smul.addr %s24, 2
          %s211 = sadd.s32 %s23, %s210
          %s212 = smul.addr %s211, 2
          %s213 = scalar_lea.hbm %s2, %s212
          %s215 = sshll.u32 %s204, 4
          %s216 = int_to_ptr.vmem [resolvable:$true] %s215
          %s217 = sshll.u32 %s213, 4
          %s218 = int_to_ptr.hbm [resolvable:$true] %s217
          %220 = dma.vmem_to_hbm [thread:$0]  %s216, 32, %s218, %s201
        $region36: #{tpu_custom_call.1} parent=27 // pred_fallthru
          _
      $region28: #{tpu_custom_call.1} parent=5 // pred_fallthru
        _
      %p221 = scmp.le.s32.totalorder 2, %s14
      // Predicated region
      $region37: #{tpu_custom_call.1} parent=5 // pred_check
        %p222 = pneg %p221
      $region38: #{tpu_custom_call.1} parent=5 // pred_check_branch
        %224 = sbr.rel (%p222) target = $region40
      $region39: #{tpu_custom_call.1} parent=5 // pred_region
        %s225 = ssub.s32 %s14, 2
        // Predicated region
        $region41: #{tpu_custom_call.1} parent=39 // pred_check
          %p226 = pneg %p111
        $region42: #{tpu_custom_call.1} parent=39 // pred_check_branch
          %228 = sbr.rel (%p226) target = $region44
        $region43: #{tpu_custom_call.1} parent=39 // pred_region
          %s229 = sand.u32 %s96, 1
          %s230 = scalar_lea.sflag [#allocation4], %s229
          %s231 = sand.u32 %s96, 1
          %s232 = smul.addr %s231, 2
          %s233 = scalar_lea.vmem [#allocation5], %s232
          %235 = dma.done %s230, 32
        $region44: #{tpu_custom_call.1} parent=39 // pred_fallthru
          _
      $region40: #{tpu_custom_call.1} parent=5 // pred_fallthru
        _
    $region6: #{tpu_custom_call.1} parent=1 // loop_footer
      %s18 = sadd.s32 1, %s14
    $region7: #{tpu_custom_call.1} parent=1 // loop_footer_branch
      %13 = sbr.rel target = $region3
    $region8: #{tpu_custom_call.1} parent=1 // loop_exit
      _
    %236 = vsyncpa [#allocation3], 1
    %s237 = scalar_lea.sflag [#allocation3], 1
    %238 = vsyncpa %s237, 1
    %239 = vsyncpa [#allocation4], 1
    %s240 = scalar_lea.sflag [#allocation4], 1
    %241 = vsyncpa %s240, 1

</llo_original>
